<compile_context>
chip_gen: v6e
topology: v6e:2x2x1
jax: 0.10.0
libtpu: 0.0.40
codegen_flags: <defaults>
</compile_context>

<pallas_src>
import jax
import jax.numpy as jnp
from jax import lax
from jax.experimental import pallas as pl
from jax.experimental.pallas import tpu as pltpu


# --- packed-parameter slab layout: (184 rows, 128 lanes) f32 -----------------
_ROW_W12   = 0      # [w1(8), w2(8), w1(8), w2(8)]            lanes 0:32
_ROW_B12   = 1      # [b1, b2, b1, b2]                        lanes 0:32
_ROW_BL2   = 2      # 2 * linear.bias                         lanes 0:16
_ROW_G1    = 3      # bn1 gamma                               lanes 0:64
_ROW_BE1C  = 4      # [bn1 beta | zeros]                      lanes 0:128
_ROW_G2    = 5      # bn2 gamma                               lanes 0:16
_ROW_BE2C  = 6      # [bn2 beta | zeros]                      lanes 0:32
_ROW_W3    = 7      # [wc3 | wc3] lanes 0:32, (A-1)*bc3 at lane 32
_ROW_WL    = 8      # [Wl; Wl] row-stacked                    rows 8:40,  lanes 0:16
_ROW_WC1   = 40     # [wc1_own | wc1_compet]                  rows 40:56, lanes 0:128
_ROW_WC2   = 56     # block-diag [[wc2, 0], [0, wc2]]         rows 56:184, lanes 0:32
_SLAB_ROWS = 184
_SLAB_LANES = 128


def _actor_kernel(obs_ref, slab_ref, out_ref):
    f32 = jnp.float32
    B, A = out_ref.shape
    BA = B * A
    eps = 1e-5
    inv_rows = 1.0 / float(BA)
    inv_valid = 1.0 / float(BA * (A - 1))

    # ---- packed parameters: one slab, static slices -------------------------
    w12   = slab_ref[_ROW_W12:_ROW_W12 + 1, 0:32]
    b12   = slab_ref[_ROW_B12:_ROW_B12 + 1, 0:32]
    bl2   = slab_ref[_ROW_BL2:_ROW_BL2 + 1, 0:16]
    g1    = slab_ref[_ROW_G1:_ROW_G1 + 1, 0:64]
    be1c  = slab_ref[_ROW_BE1C:_ROW_BE1C + 1, :]
    g2    = slab_ref[_ROW_G2:_ROW_G2 + 1, 0:16]
    be2c  = slab_ref[_ROW_BE2C:_ROW_BE2C + 1, 0:32]
    w3c   = slab_ref[_ROW_W3:_ROW_W3 + 1, 0:32]
    bc3s  = slab_ref[_ROW_W3:_ROW_W3 + 1, 32:33]        # (A-1) * conv3.bias
    wl32  = slab_ref[_ROW_WL:_ROW_WL + 32, 0:16]        # [Wl; Wl]
    wc1c  = slab_ref[_ROW_WC1:_ROW_WC1 + 16, :]         # (16, 128)
    wc2bd = slab_ref[_ROW_WC2:_ROW_WC2 + 128, 0:32]     # (128, 32)

    # ---- fused heads: obs already lane-replicated in the wrapper ------------
    # obs cols: [h1A x8 | h2 x8 | h1B x8 | h2 x8]  -> s = [sA | sB]
    s = jnp.maximum(obs_ref[...] * w12 + b12, 0.0)                    # (BA, 32)
    # phase_representations = sA @ Wl + sB @ Wl + 2*bl  (one matmul, stacked Wl)
    rep = jnp.dot(s, wl32, preferred_element_type=f32) + bl2          # (BA, 16)

    # ---- conv1 (32 -> 64), fused own/competing halves: u1 | v1 --------------
    uv1 = jnp.dot(rep, wc1c, preferred_element_type=f32)              # (BA, 128)

    def bn_fused(uv, C, gamma, beta_cat):
        # Training-mode BatchNorm over the valid (p != q) pixels of
        #   y[b,p,q,c] = u[b,p,c] + v[b,q,c] (+ conv bias, which cancels),
        # kept in the fused separable layout uv = [U | V].
        mean = jnp.sum(uv, axis=0, keepdims=True) * inv_rows          # (1, 2C)
        duv = uv - mean                                               # (BA, 2C)
        du = duv[:, :C]
        dv = duv[:, C:]
        ss = jnp.sum(du * du + dv * dv, axis=0, keepdims=True)        # (1, C)
        # per-batch sums via a layout-preserving sublane-group reduce
        p = jnp.sum(duv.reshape(B, A, 2 * C), axis=1)                 # (B, 2C)
        cross = (jnp.sum(p[:, :C] * p[:, C:], axis=0, keepdims=True)
                 - jnp.sum(du * dv, axis=0, keepdims=True))           # (1, C)
        var = jnp.maximum(((A - 1.0) * ss + 2.0 * cross) * inv_valid, 0.0)
        scale = lax.rsqrt(var + eps) * gamma                          # EUP rsqrt
        scale2 = jnp.concatenate([scale, scale], axis=1)              # (1, 2C)
        return duv * scale2 + beta_cat                                # beta only on U half

    uv1b = bn_fused(uv1, 64, g1, be1c)                                # (BA, 128)

    # ---- conv2 (64 -> 16), fused via block-diagonal RHS: u2 | v2 ------------
    uv2 = jnp.dot(uv1b, wc2bd, preferred_element_type=f32)            # (BA, 32)
    uv2b = bn_fused(uv2, 16, g2, be2c)                                # (BA, 32)

    # ---- conv3 (16 -> 1) as VPU multiply + lane reduce, masked sum folded ---
    prod = (uv2b * w3c).reshape(B, A, 32)
    u3 = jnp.sum(prod[..., 0:16], axis=-1)                            # (B, A)
    v3 = jnp.sum(prod[..., 16:32], axis=-1)                           # (B, A)
    sv = jnp.sum(v3, axis=1, keepdims=True)                           # (B, 1)
    scores = (A - 1.0) * u3 + (sv - v3) + bc3s                        # (B, A)
    out_ref[...] = scores.astype(out_ref.dtype)


def init_params(key):
    """Deterministic synthetic parameters (torch weights stored transposed)."""
    ks = jax.random.split(key, 16)

    def u(k, shape, scale):
        return jax.random.uniform(k, shape, jnp.float32, -scale, scale)

    return dict(
        w1=u(ks[0], (1, 8), 1.0),     # linear_h1.weight (8,1) -> (1,8)
        b1=u(ks[1], (1, 8), 1.0),
        w2=u(ks[2], (1, 8), 1.0),     # linear_h2
        b2=u(ks[3], (1, 8), 1.0),
        wl=u(ks[4], (16, 16), 0.25),  # linear.weight (16,16)^T
        bl=u(ks[5], (1, 16), 0.25),
        wc1=u(ks[6], (32, 64), 0.18), # conv1.weight (64,32,1,1) -> (32,64)
        bc1=u(ks[7], (1, 64), 0.18),
        g1=1.0 + u(ks[8], (1, 64), 0.1),
        be1=u(ks[9], (1, 64), 0.1),
        wc2=u(ks[10], (64, 16), 0.12),
        bc2=u(ks[11], (1, 16), 0.12),
        g2=1.0 + u(ks[12], (1, 16), 0.1),
        be2=u(ks[13], (1, 16), 0.1),
        wc3=u(ks[14], (16, 1), 0.25),
        bc3=u(ks[15], (1, 1), 0.25),
    )


def pack_actor_params(params, action_size):
    """Pack all parameters into one (184, 128) f32 slab.  Call ONCE per param set."""
    A = action_size
    assert A >= 2, "action_size must be >= 2 (A-1 appears as a divisor)"
    L = _SLAB_LANES
    f32 = jnp.float32

    def row(vec):
        v = jnp.asarray(vec, f32).reshape(-1)
        return jnp.pad(v, (0, L - v.shape[0]))[None, :]

    w1 = params["w1"].reshape(-1); b1 = params["b1"].reshape(-1)
    w2 = params["w2"].reshape(-1); b2 = params["b2"].reshape(-1)
    wc3 = params["wc3"].reshape(-1); bc3 = params["bc3"].reshape(-1)

    head = jnp.concatenate([
        row(jnp.concatenate([w1, w2, w1, w2])),                          # 0
        row(jnp.concatenate([b1, b2, b1, b2])),                          # 1
        row(2.0 * params["bl"].reshape(-1)),                             # 2
        row(params["g1"].reshape(-1)),                                   # 3
        row(params["be1"].reshape(-1)),                                  # 4: [be1 | 0]
        row(params["g2"].reshape(-1)),                                   # 5
        row(params["be2"].reshape(-1)),                                  # 6: [be2 | 0]
        row(jnp.concatenate([wc3, wc3, (A - 1.0) * bc3])),               # 7
    ], axis=0)                                                           # (8, 128)

    wl = jnp.asarray(params["wl"], f32)                                  # (16, 16)
    wl32 = jnp.pad(jnp.concatenate([wl, wl], axis=0), ((0, 0), (0, L - 16)))
    wc1 = jnp.asarray(params["wc1"], f32)                                # (32, 64)
    wc1cat = jnp.concatenate([wc1[:16], wc1[16:]], axis=1)               # (16, 128)
    wc2 = jnp.asarray(params["wc2"], f32)                                # (64, 16)
    z = jnp.zeros((64, 16), f32)
    wc2bd = jnp.concatenate([jnp.concatenate([wc2, z], axis=1),
                             jnp.concatenate([z, wc2], axis=1)], axis=0) # (128, 32)
    wc2bd = jnp.pad(wc2bd, ((0, 0), (0, L - 32)))
    # NOTE: conv1/conv2 biases (bc1, bc2) cancel exactly through training-mode
    # BatchNorm and are intentionally not packed.
    slab = jnp.concatenate([head, wl32, wc1cat, wc2bd], axis=0)          # (184, 128)
    assert slab.shape == (_SLAB_ROWS, _SLAB_LANES)
    return slab


@jax.jit
def actor_forward(slab, obs_h1_A, obs_h1_B, obs_h2):
    B, A = obs_h1_A.shape
    a = obs_h1_A.reshape(-1, 1).astype(jnp.float32)
    b = obs_h1_B.reshape(-1, 1).astype(jnp.float32)
    h = obs_h2.reshape(-1, 1).astype(jnp.float32)
    ones8 = jnp.ones((1, 8), jnp.float32)
    # lane-replicated obs: [h1A x8 | h2 x8 | h1B x8 | h2 x8]  -> (B*A, 32)
    obs32 = jnp.concatenate([a * ones8, h * ones8, b * ones8, h * ones8], axis=1)

    vmem = pl.BlockSpec(memory_space=pltpu.MemorySpace.VMEM)
    scores = pl.pallas_call(
        _actor_kernel,
        out_shape=jax.ShapeDtypeStruct((B, A), jnp.float32),
        in_specs=[vmem, vmem],
        out_specs=vmem,
    )(obs32, slab)
    return scores


def actor_reference(params, obs_h1_A, obs_h1_B, obs_h2):
    """Literal pure-JAX transcription of the PyTorch forward (training-mode BN)."""
    B, A = obs_h1_A.shape
    w1, b1 = params["w1"][0], params["b1"][0]
    w2, b2 = params["w2"][0], params["b2"][0]
    wl, bl = params["wl"], params["bl"][0]

    def lin1(x):
        return jax.nn.relu(x[:, None] * w1[None, :] + b1[None, :])

    def lin2(x):
        return jax.nn.relu(x[:, None] * w2[None, :] + b2[None, :])

    reps = []
    for p in range(A):
        oa = jnp.concatenate([lin1(obs_h1_A[:, p]), lin2(obs_h2[:, p])], 1) @ wl + bl
        ob = jnp.concatenate([lin1(obs_h1_B[:, p]), lin2(obs_h2[:, p])], 1) @ wl + bl
        reps.append(oa + ob)
    rep = jnp.stack(reps, axis=1)                      # (B, A, 16)

    cols = []
    for p in range(A):
        row = [jnp.concatenate([rep[:, p], rep[:, q]], axis=1)
               for q in range(A) if q != p]
        cols.append(jnp.stack(row, axis=1))            # (B, A-1, 32)
    x = jnp.stack(cols, axis=1)                        # (B, A, A-1, 32)

    def conv_bn(x, w, b, g, be):
        y = x @ w + b[0]
        m = jnp.mean(y, axis=(0, 1, 2), keepdims=True)
        v = jnp.mean((y - m) ** 2, axis=(0, 1, 2), keepdims=True)
        return (y - m) / jnp.sqrt(v + 1e-5) * g[0] + be[0]

    y = conv_bn(x, params["wc1"], params["bc1"], params["g1"], params["be1"])
    y = conv_bn(y, params["wc2"], params["bc2"], params["g2"], params["be2"])
    y = y @ params["wc3"] + params["bc3"][0]           # (B, A, A-1, 1)
    return jnp.sum(y[..., 0], axis=2)                  # (B, A)


if __name__ == "__main__":
    B, A = 4, 8                      # batch, action_size (number of phases)
    key = jax.random.PRNGKey(0)
    kp, ka, kb, kc = jax.random.split(key, 4)
    params = init_params(kp)
    obs_h1_A = jax.random.uniform(ka, (B, A), jnp.float32)
    obs_h1_B = jax.random.uniform(kb, (B, A), jnp.float32)
    obs_h2 = jax.random.uniform(kc, (B, A), jnp.float32)

    # Pack parameters ONCE (hoisted out of the per-call hot path).
    slab = jax.block_until_ready(pack_actor_params(params, A))

    scores = actor_forward(slab, obs_h1_A, obs_h1_B, obs_h2)
    jax.block_until_ready(scores)

    ref = actor_reference(params, obs_h1_A, obs_h1_B, obs_h2)
    assert scores.shape == (B, A), scores.shape
    assert bool(jnp.allclose(scores, ref, atol=2e-3, rtol=2e-3)), (
        float(jnp.max(jnp.abs(scores - ref))))
    print("KERNEL_OK")
</pallas_src>

<mosaic_0001>
module attributes {stable_mosaic.version = 11 : i64} {
  func.func @_actor_kernel(%arg0: memref<32x32xf32, #tpu.memory_space<vmem>>, %arg1: memref<184x128xf32, #tpu.memory_space<vmem>>, %arg2: memref<4x8xf32, #tpu.memory_space<vmem>>) attributes {dimension_semantics = [], scalar_prefetch = 0 : i64, scratch_operands = 0 : i64, tpu.core_type = #tpu.core_type<tc>} {
    %c0 = arith.constant 0 : index
    %c0_0 = arith.constant 0 : index
    %0 = vector.load %arg1[%c0, %c0_0] : memref<184x128xf32, #tpu.memory_space<vmem>>, vector<1x32xf32>
    %c1 = arith.constant 1 : index
    %c0_1 = arith.constant 0 : index
    %1 = vector.load %arg1[%c1, %c0_1] : memref<184x128xf32, #tpu.memory_space<vmem>>, vector<1x32xf32>
    %c2 = arith.constant 2 : index
    %c0_2 = arith.constant 0 : index
    %2 = vector.load %arg1[%c2, %c0_2] : memref<184x128xf32, #tpu.memory_space<vmem>>, vector<1x16xf32>
    %c3 = arith.constant 3 : index
    %c0_3 = arith.constant 0 : index
    %3 = vector.load %arg1[%c3, %c0_3] : memref<184x128xf32, #tpu.memory_space<vmem>>, vector<1x64xf32>
    %c4 = arith.constant 4 : index
    %c0_4 = arith.constant 0 : index
    %4 = vector.load %arg1[%c4, %c0_4] : memref<184x128xf32, #tpu.memory_space<vmem>>, vector<1x128xf32>
    %c5 = arith.constant 5 : index
    %c0_5 = arith.constant 0 : index
    %5 = vector.load %arg1[%c5, %c0_5] : memref<184x128xf32, #tpu.memory_space<vmem>>, vector<1x16xf32>
    %c6 = arith.constant 6 : index
    %c0_6 = arith.constant 0 : index
    %6 = vector.load %arg1[%c6, %c0_6] : memref<184x128xf32, #tpu.memory_space<vmem>>, vector<1x32xf32>
    %c7 = arith.constant 7 : index
    %c0_7 = arith.constant 0 : index
    %7 = vector.load %arg1[%c7, %c0_7] : memref<184x128xf32, #tpu.memory_space<vmem>>, vector<1x32xf32>
    %c7_8 = arith.constant 7 : index
    %c32 = arith.constant 32 : index
    %8 = vector.load %arg1[%c7_8, %c32] : memref<184x128xf32, #tpu.memory_space<vmem>>, vector<1x1xf32>
    %c8 = arith.constant 8 : index
    %c0_9 = arith.constant 0 : index
    %9 = vector.load %arg1[%c8, %c0_9] : memref<184x128xf32, #tpu.memory_space<vmem>>, vector<32x16xf32>
    %c40 = arith.constant 40 : index
    %c0_10 = arith.constant 0 : index
    %10 = vector.load %arg1[%c40, %c0_10] : memref<184x128xf32, #tpu.memory_space<vmem>>, vector<16x128xf32>
    %c56 = arith.constant 56 : index
    %c0_11 = arith.constant 0 : index
    %11 = vector.load %arg1[%c56, %c0_11] : memref<184x128xf32, #tpu.memory_space<vmem>>, vector<128x32xf32>
    %c0_12 = arith.constant 0 : index
    %c0_13 = arith.constant 0 : index
    %12 = vector.load %arg0[%c0_12, %c0_13] : memref<32x32xf32, #tpu.memory_space<vmem>>, vector<32x32xf32>
    %13 = vector.broadcast %0 : vector<1x32xf32> to vector<32x32xf32>
    %14 = arith.mulf %12, %13 : vector<32x32xf32>
    %15 = vector.broadcast %1 : vector<1x32xf32> to vector<32x32xf32>
    %16 = arith.addf %14, %15 : vector<32x32xf32>
    %cst = arith.constant 0.000000e+00 : f32
    %17 = vector.broadcast %cst : f32 to vector<32x32xf32>
    %18 = arith.maximumf %16, %17 : vector<32x32xf32>
    %cst_14 = arith.constant dense<0.000000e+00> : vector<32x16xf32>
    %19 = tpu.matmul %18, %9, %cst_14 {dimension_numbers = #tpu.dot_dimension_numbers<[1], [0], [0], [1], [0, 0, 1, 1], [], []>} : vector<32x32xf32>, vector<32x16xf32>, vector<32x16xf32> -> vector<32x16xf32>
    %20 = vector.broadcast %2 : vector<1x16xf32> to vector<32x16xf32>
    %21 = arith.addf %19, %20 : vector<32x16xf32>
    %cst_15 = arith.constant dense<0.000000e+00> : vector<32x128xf32>
    %22 = tpu.matmul %21, %10, %cst_15 {dimension_numbers = #tpu.dot_dimension_numbers<[1], [0], [0], [1], [0, 0, 1, 1], [], []>} : vector<32x16xf32>, vector<16x128xf32>, vector<32x128xf32> -> vector<32x128xf32>
    %cst_16 = arith.constant dense<0.000000e+00> : vector<128xf32>
    %23 = vector.multi_reduction <add>, %22, %cst_16 [0] : vector<32x128xf32> to vector<128xf32>
    %24 = vector.shape_cast %23 : vector<128xf32> to vector<1x128xf32>
    %cst_17 = arith.constant 3.125000e-02 : f32
    %25 = vector.broadcast %cst_17 : f32 to vector<1x128xf32>
    %26 = arith.mulf %24, %25 : vector<1x128xf32>
    %27 = vector.broadcast %26 : vector<1x128xf32> to vector<32x128xf32>
    %28 = arith.subf %22, %27 : vector<32x128xf32>
    %29 = vector.extract_strided_slice %28 {offsets = [0, 0], sizes = [32, 64], strides = [1, 1]} : vector<32x128xf32> to vector<32x64xf32>
    %30 = vector.extract_strided_slice %28 {offsets = [0, 64], sizes = [32, 64], strides = [1, 1]} : vector<32x128xf32> to vector<32x64xf32>
    %31 = arith.mulf %29, %29 : vector<32x64xf32>
    %32 = arith.mulf %30, %30 : vector<32x64xf32>
    %33 = arith.addf %31, %32 : vector<32x64xf32>
    %cst_18 = arith.constant dense<0.000000e+00> : vector<64xf32>
    %34 = vector.multi_reduction <add>, %33, %cst_18 [0] : vector<32x64xf32> to vector<64xf32>
    %35 = vector.shape_cast %34 : vector<64xf32> to vector<1x64xf32>
    %36 = vector.shape_cast %28 : vector<32x128xf32> to vector<4x8x128xf32>
    %cst_19 = arith.constant dense<0.000000e+00> : vector<4x128xf32>
    %37 = vector.multi_reduction <add>, %36, %cst_19 [1] : vector<4x8x128xf32> to vector<4x128xf32>
    %38 = vector.extract_strided_slice %37 {offsets = [0, 0], sizes = [4, 64], strides = [1, 1]} : vector<4x128xf32> to vector<4x64xf32>
    %39 = vector.extract_strided_slice %37 {offsets = [0, 64], sizes = [4, 64], strides = [1, 1]} : vector<4x128xf32> to vector<4x64xf32>
    %40 = arith.mulf %38, %39 : vector<4x64xf32>
    %cst_20 = arith.constant dense<0.000000e+00> : vector<64xf32>
    %41 = vector.multi_reduction <add>, %40, %cst_20 [0] : vector<4x64xf32> to vector<64xf32>
    %42 = vector.shape_cast %41 : vector<64xf32> to vector<1x64xf32>
    %43 = arith.mulf %29, %30 : vector<32x64xf32>
    %cst_21 = arith.constant dense<0.000000e+00> : vector<64xf32>
    %44 = vector.multi_reduction <add>, %43, %cst_21 [0] : vector<32x64xf32> to vector<64xf32>
    %45 = vector.shape_cast %44 : vector<64xf32> to vector<1x64xf32>
    %46 = arith.subf %42, %45 : vector<1x64xf32>
    %cst_22 = arith.constant 7.000000e+00 : f32
    %47 = vector.broadcast %cst_22 : f32 to vector<1x64xf32>
    %48 = arith.mulf %47, %35 : vector<1x64xf32>
    %cst_23 = arith.constant 2.000000e+00 : f32
    %49 = vector.broadcast %cst_23 : f32 to vector<1x64xf32>
    %50 = arith.mulf %49, %46 : vector<1x64xf32>
    %51 = arith.addf %48, %50 : vector<1x64xf32>
    %cst_24 = arith.constant 0.00446428591 : f32
    %52 = vector.broadcast %cst_24 : f32 to vector<1x64xf32>
    %53 = arith.mulf %51, %52 : vector<1x64xf32>
    %cst_25 = arith.constant 0.000000e+00 : f32
    %54 = vector.broadcast %cst_25 : f32 to vector<1x64xf32>
    %55 = arith.maximumf %53, %54 : vector<1x64xf32>
    %cst_26 = arith.constant 9.99999974E-6 : f32
    %56 = vector.broadcast %cst_26 : f32 to vector<1x64xf32>
    %57 = arith.addf %55, %56 : vector<1x64xf32>
    %58 = math.rsqrt %57 : vector<1x64xf32>
    %59 = arith.mulf %58, %3 : vector<1x64xf32>
    %60 = tpu.concatenate %59, %59 in 1 : vector<1x64xf32>, vector<1x64xf32> -> vector<1x128xf32>
    %61 = vector.broadcast %60 : vector<1x128xf32> to vector<32x128xf32>
    %62 = arith.mulf %28, %61 : vector<32x128xf32>
    %63 = vector.broadcast %4 : vector<1x128xf32> to vector<32x128xf32>
    %64 = arith.addf %62, %63 : vector<32x128xf32>
    %cst_27 = arith.constant dense<0.000000e+00> : vector<32x32xf32>
    %65 = tpu.matmul %64, %11, %cst_27 {dimension_numbers = #tpu.dot_dimension_numbers<[1], [0], [0], [1], [0, 0, 1, 1], [], []>} : vector<32x128xf32>, vector<128x32xf32>, vector<32x32xf32> -> vector<32x32xf32>
    %cst_28 = arith.constant dense<0.000000e+00> : vector<32xf32>
    %66 = vector.multi_reduction <add>, %65, %cst_28 [0] : vector<32x32xf32> to vector<32xf32>
    %67 = vector.shape_cast %66 : vector<32xf32> to vector<1x32xf32>
    %cst_29 = arith.constant 3.125000e-02 : f32
    %68 = vector.broadcast %cst_29 : f32 to vector<1x32xf32>
    %69 = arith.mulf %67, %68 : vector<1x32xf32>
    %70 = vector.broadcast %69 : vector<1x32xf32> to vector<32x32xf32>
    %71 = arith.subf %65, %70 : vector<32x32xf32>
    %72 = vector.extract_strided_slice %71 {offsets = [0, 0], sizes = [32, 16], strides = [1, 1]} : vector<32x32xf32> to vector<32x16xf32>
    %73 = vector.extract_strided_slice %71 {offsets = [0, 16], sizes = [32, 16], strides = [1, 1]} : vector<32x32xf32> to vector<32x16xf32>
    %74 = arith.mulf %72, %72 : vector<32x16xf32>
    %75 = arith.mulf %73, %73 : vector<32x16xf32>
    %76 = arith.addf %74, %75 : vector<32x16xf32>
    %cst_30 = arith.constant dense<0.000000e+00> : vector<16xf32>
    %77 = vector.multi_reduction <add>, %76, %cst_30 [0] : vector<32x16xf32> to vector<16xf32>
    %78 = vector.shape_cast %77 : vector<16xf32> to vector<1x16xf32>
    %79 = vector.shape_cast %71 : vector<32x32xf32> to vector<4x8x32xf32>
    %cst_31 = arith.constant dense<0.000000e+00> : vector<4x32xf32>
    %80 = vector.multi_reduction <add>, %79, %cst_31 [1] : vector<4x8x32xf32> to vector<4x32xf32>
    %81 = vector.extract_strided_slice %80 {offsets = [0, 0], sizes = [4, 16], strides = [1, 1]} : vector<4x32xf32> to vector<4x16xf32>
    %82 = vector.extract_strided_slice %80 {offsets = [0, 16], sizes = [4, 16], strides = [1, 1]} : vector<4x32xf32> to vector<4x16xf32>
    %83 = arith.mulf %81, %82 : vector<4x16xf32>
    %cst_32 = arith.constant dense<0.000000e+00> : vector<16xf32>
    %84 = vector.multi_reduction <add>, %83, %cst_32 [0] : vector<4x16xf32> to vector<16xf32>
    %85 = vector.shape_cast %84 : vector<16xf32> to vector<1x16xf32>
    %86 = arith.mulf %72, %73 : vector<32x16xf32>
    %cst_33 = arith.constant dense<0.000000e+00> : vector<16xf32>
    %87 = vector.multi_reduction <add>, %86, %cst_33 [0] : vector<32x16xf32> to vector<16xf32>
    %88 = vector.shape_cast %87 : vector<16xf32> to vector<1x16xf32>
    %89 = arith.subf %85, %88 : vector<1x16xf32>
    %cst_34 = arith.constant 7.000000e+00 : f32
    %90 = vector.broadcast %cst_34 : f32 to vector<1x16xf32>
    %91 = arith.mulf %90, %78 : vector<1x16xf32>
    %cst_35 = arith.constant 2.000000e+00 : f32
    %92 = vector.broadcast %cst_35 : f32 to vector<1x16xf32>
    %93 = arith.mulf %92, %89 : vector<1x16xf32>
    %94 = arith.addf %91, %93 : vector<1x16xf32>
    %cst_36 = arith.constant 0.00446428591 : f32
    %95 = vector.broadcast %cst_36 : f32 to vector<1x16xf32>
    %96 = arith.mulf %94, %95 : vector<1x16xf32>
    %cst_37 = arith.constant 0.000000e+00 : f32
    %97 = vector.broadcast %cst_37 : f32 to vector<1x16xf32>
    %98 = arith.maximumf %96, %97 : vector<1x16xf32>
    %cst_38 = arith.constant 9.99999974E-6 : f32
    %99 = vector.broadcast %cst_38 : f32 to vector<1x16xf32>
    %100 = arith.addf %98, %99 : vector<1x16xf32>
    %101 = math.rsqrt %100 : vector<1x16xf32>
    %102 = arith.mulf %101, %5 : vector<1x16xf32>
    %103 = tpu.concatenate %102, %102 in 1 : vector<1x16xf32>, vector<1x16xf32> -> vector<1x32xf32>
    %104 = vector.broadcast %103 : vector<1x32xf32> to vector<32x32xf32>
    %105 = arith.mulf %71, %104 : vector<32x32xf32>
    %106 = vector.broadcast %6 : vector<1x32xf32> to vector<32x32xf32>
    %107 = arith.addf %105, %106 : vector<32x32xf32>
    %108 = vector.broadcast %7 : vector<1x32xf32> to vector<32x32xf32>
    %109 = arith.mulf %107, %108 : vector<32x32xf32>
    %110 = vector.shape_cast %109 : vector<32x32xf32> to vector<4x8x32xf32>
    %111 = vector.extract_strided_slice %110 {offsets = [0, 0, 0], sizes = [4, 8, 16], strides = [1, 1, 1]} : vector<4x8x32xf32> to vector<4x8x16xf32>
    %cst_39 = arith.constant dense<0.000000e+00> : vector<4x8xf32>
    %112 = vector.multi_reduction <add>, %111, %cst_39 [2] : vector<4x8x16xf32> to vector<4x8xf32>
    %113 = vector.extract_strided_slice %110 {offsets = [0, 0, 16], sizes = [4, 8, 16], strides = [1, 1, 1]} : vector<4x8x32xf32> to vector<4x8x16xf32>
    %cst_40 = arith.constant dense<0.000000e+00> : vector<4x8xf32>
    %114 = vector.multi_reduction <add>, %113, %cst_40 [2] : vector<4x8x16xf32> to vector<4x8xf32>
    %cst_41 = arith.constant dense<0.000000e+00> : vector<4xf32>
    %115 = vector.multi_reduction <add>, %114, %cst_41 [1] : vector<4x8xf32> to vector<4xf32>
    %116 = vector.shape_cast %115 : vector<4xf32> to vector<4x1xf32>
    %cst_42 = arith.constant 7.000000e+00 : f32
    %117 = vector.broadcast %cst_42 : f32 to vector<4x8xf32>
    %118 = arith.mulf %117, %112 : vector<4x8xf32>
    %119 = vector.broadcast %116 : vector<4x1xf32> to vector<4x8xf32>
    %120 = arith.subf %119, %114 : vector<4x8xf32>
    %121 = arith.addf %118, %120 : vector<4x8xf32>
    %122 = vector.broadcast %8 : vector<1x1xf32> to vector<4x8xf32>
    %123 = arith.addf %121, %122 : vector<4x8xf32>
    %c0_43 = arith.constant 0 : index
    %c0_44 = arith.constant 0 : index
    %124 = vector.load %arg2[%c0_43, %c0_44] : memref<4x8xf32, #tpu.memory_space<vmem>>, vector<4x8xf32>
    tpu.vector_store %arg2[%c0_43, %c0_44], %123 {strides = array<i32>} : memref<4x8xf32, #tpu.memory_space<vmem>>, vector<4x8xf32>,
    return
  }
}

</mosaic_0001>

<llo_original>
// kernel: mul.19
$region0: #{mul.19}
  %s0 = inlined_call_operand.vmem [shape: f32[4,8], index: 0, kind: input, shape index: {}]
  %s1 = inlined_call_operand.vmem [shape: f32[32], index: 1, kind: output, shape index: {}]
  $region1: #{mul.19} parent=0
    #allocation0 [shape = 'u8[4096]{0}', space=vmem, size = 0x1000, scoped, tag = 'scoped mem for output reshape']
    #allocation1 [shape = 'u8[4096]{0}', space=vmem, size = 0x1000, scoped, tag = 'scoped mem for input reshape']
    %s3 = sshll.u32 1, 4
    %s4 = ssub.s32 %s3, 1
    %v5 = vld [vmem:[%s0] sm:%s4]
    %6 = vst [vmem:[#allocation1] sm:%s4] %v5
    %v7 = vld [vmem:[#allocation1] sm:$0x1]
    %vm8 = vcmask 64512
    %9 = vst.msk [vmem:[#allocation0] sm:$0x1] %vm8, %v7
    %s10 = scalar_lea.vmem [#allocation1], 3
    %v11 = vld [vmem:[%s10] sm:$0x1]
    %12 = vrot.lane.b32.xlu0 %v11, 24
    %v13 = vpop.permute.xlu0 %12
    %vm14 = vcmask 261312
    %15 = vst.msk [vmem:[#allocation0] sm:$0x1] %vm14, %v13
    %s16 = scalar_lea.vmem [#allocation1], 2
    %v17 = vld [vmem:[%s16] sm:$0x1]
    %18 = vrot.lane.b32.xlu0 %v17, 16
    %v19 = vpop.permute.xlu0 %18
    %vm20 = vcmask 195712
    %21 = vst.msk [vmem:[#allocation0] sm:$0x1] %vm20, %v19
    %s22 = scalar_lea.vmem [#allocation1], 1
    %v23 = vld [vmem:[%s22] sm:$0x1]
    %24 = vrot.lane.b32.xlu0 %v23, 8
    %v25 = vpop.permute.xlu0 %24
    %vm26 = vcmask 130112
    %27 = vst.msk [vmem:[#allocation0] sm:$0x1] %vm26, %v25
    %s29 = sshll.u32 1, 1
    %s30 = ssub.s32 %s29, 1
    %v32 = vld [vmem:[#allocation0] sm:%s30]
    %s33 = sshll.u32 1, 1
    %s34 = ssub.s32 %s33, 1
    %35 = vst [vmem:[%s1] sm:%s34] %v32

// kernel: mul.17
$region0: #{mul.17}
  #allocation0 [shape = 's32[1]{0}', space=sflag, size = 0x4, scoped, tag = 'scoped memory for mul.17']
  %s0 = inlined_call_operand.vmem [shape: f32[32], index: 0, kind: input, shape index: {}]
  %s1 = inlined_call_operand.vmem [shape: f32[32,8], index: 1, kind: output, shape index: {}]
  // Predicated region
  $region2: #{mul.17} parent=0 // pred_check
    _
  $region3: #{mul.17} parent=0 // pred_check_branch
    %3 = sbr.rel (0) target = $region5
  $region4: #{mul.17} parent=0 // pred_region
    _
  $region5: #{mul.17} parent=0 // pred_fallthru
    _
  %v4 = vld [vmem:[%s0] ss:$0 sm:$0xff]
  %6 = vbcast.lane.b32.xlu0 %v4, 256
  %v7 = vpop.permute.xlu0 %6
  %8 = vst [vmem:[%s1] sm:$0xff] %v7
  %v9 = vld [vmem:[%s0] ss:$0 sm:$0xff]
  %s11 = sor.u32 256, 8
  %12 = vbcast.lane.b32.xlu0 %v9, %s11
  %v13 = vpop.permute.xlu0 %12
  %s14 = scalar_lea.vmem %s1, 8
  %15 = vst [vmem:[%s14] sm:$0xff] %v13
  %v16 = vld [vmem:[%s0] ss:$0 sm:$0xff]
  %s18 = sor.u32 256, 16
  %19 = vbcast.lane.b32.xlu0 %v16, %s18
  %v20 = vpop.permute.xlu0 %19
  %s21 = scalar_lea.vmem %s1, 16
  %22 = vst [vmem:[%s21] sm:$0xff] %v20
  %v23 = vld [vmem:[%s0] ss:$0 sm:$0xff]
  %s25 = sor.u32 256, 24
  %26 = vbcast.lane.b32.xlu0 %v23, %s25
  %v27 = vpop.permute.xlu0 %26
  %s28 = scalar_lea.vmem %s1, 24
  %29 = vst [vmem:[%s28] sm:$0xff] %v27

// kernel: mul.13
$region0: #{mul.13}
  %s0 = inlined_call_operand.hbm [shape: f32[4,8], index: 0, kind: input, shape index: {}]
  %s1 = inlined_call_operand.vmem [shape: f32[32], index: 1, kind: output, shape index: {}]
  $region1: #{mul.13} parent=0
    #allocation0 [shape = 'u8[2048]{0}', space=vmem, size = 0x800, scoped, tag = 'operand span for operand 0']
    #allocation1 [shape = 's32[1]{0}', space=sflag, size = 0x4, scoped, tag = 'scoped memory for mul.13']
    #allocation2 [shape = 'u8[4096]{0}', space=vmem, size = 0x1000, scoped, tag = 'scoped mem for output reshape']
    #allocation3 [shape = 'u8[4096]{0}', space=vmem, size = 0x1000, scoped, tag = 'scoped mem for input reshape']
    %2 = vsyncpa [#allocation1], 0
    %s4 = ssub.s32 64, 64
    %5 = vsyncadd [#allocation1], %s4
    %s7 = sshll.u32 [#allocation0], 4
    %s8 = int_to_ptr.vmem [resolvable:$true] %s7
    %10 = dma.hbm_to_vmem [thread:$0]  %s0, 64, %s8, [#allocation1]
    %11 = dma.done [#allocation1], 64
    %s13 = sshll.u32 1, 4
    %s14 = ssub.s32 %s13, 1
    %v15 = vld [vmem:[#allocation0] sm:%s14]
    %16 = vst [vmem:[#allocation3] sm:%s14] %v15
    %v17 = vld [vmem:[#allocation3] sm:$0x1]
    %vm18 = vcmask 64512
    %19 = vst.msk [vmem:[#allocation2] sm:$0x1] %vm18, %v17
    %s20 = scalar_lea.vmem [#allocation3], 3
    %v21 = vld [vmem:[%s20] sm:$0x1]
    %22 = vrot.lane.b32.xlu0 %v21, 24
    %v23 = vpop.permute.xlu0 %22
    %vm24 = vcmask 261312
    %25 = vst.msk [vmem:[#allocation2] sm:$0x1] %vm24, %v23
    %s26 = scalar_lea.vmem [#allocation3], 2
    %v27 = vld [vmem:[%s26] sm:$0x1]
    %28 = vrot.lane.b32.xlu0 %v27, 16
    %v29 = vpop.permute.xlu0 %28
    %vm30 = vcmask 195712
    %31 = vst.msk [vmem:[#allocation2] sm:$0x1] %vm30, %v29
    %s32 = scalar_lea.vmem [#allocation3], 1
    %v33 = vld [vmem:[%s32] sm:$0x1]
    %34 = vrot.lane.b32.xlu0 %v33, 8
    %v35 = vpop.permute.xlu0 %34
    %vm36 = vcmask 130112
    %37 = vst.msk [vmem:[#allocation2] sm:$0x1] %vm36, %v35
    %s39 = sshll.u32 1, 1
    %s40 = ssub.s32 %s39, 1
    %v42 = vld [vmem:[#allocation2] sm:%s40]
    %s43 = sshll.u32 1, 1
    %s44 = ssub.s32 %s43, 1
    %45 = vst [vmem:[%s1] sm:%s44] %v42
    %46 = vsyncpa [#allocation1], 1

// kernel: actor_forward.1
$region0: #{actor_forward.1}
  #allocation0 [shape = 'u32[]', space=smem, size = 0x4, offset = 0x4, fixed_abs, tag = 'smem constant byte address 0x4 - core index']
  #allocation1 [shape = 'u32[144,128]{1,0:T(1,128)}', space=vmem, size = 0x12000, scoped, tag = 'internal scratch']
  %s0 = inlined_call_operand.vmem [shape: f32[32,32], index: 0, kind: input, shape index: {}]
  %s1 = inlined_call_operand.vmem [shape: f32[184,128], index: 1, kind: input, shape index: {}]
  %s2 = inlined_call_operand.hbm [shape: f32[4,8], index: 2, kind: output, shape index: {}]
  %s3 = sld [smem:[#allocation0]]
  $region18: #{actor_forward.1} parent=0
    _
  %s5 = ssub.s32 1, %s3
  %s6 = scalar_select 0, %s5, %s3
  $region1: #{actor_forward.1} parent=0
    #allocation2 [shape = 'u8[2048]{0}', space=vmem, size = 0x800, scoped, tag = 'output window, operand 0, single buffered']
    #allocation3 [shape = 's32[1]{0}', space=sflag, size = 0x4, scoped, tag = 'scoped memory for actor_forward.1']
    %7 = vsyncpa [#allocation3], 0
    // Predicated region
    $region2: #{actor_forward.1} parent=1 // pred_check
      _
    $region3: #{actor_forward.1} parent=1 // pred_check_branch
      %9 = sbr.rel (0) target = $region5
    $region4: #{actor_forward.1} parent=1 // pred_region
      _
    $region5: #{actor_forward.1} parent=1 // pred_fallthru
      _
    // Predicated region
    $region6: #{actor_forward.1} parent=1 // pred_check
      _
    $region7: #{actor_forward.1} parent=1 // pred_check_branch
      %11 = sbr.rel (0) target = $region9
    $region8: #{actor_forward.1} parent=1 // pred_region
      _
    $region9: #{actor_forward.1} parent=1 // pred_fallthru
      _
    %v12 = vld [vmem:[%s1] sm:$0x1]
    %v13 = vld [vmem:[%s1 + $0x1] sm:$0x1]
    %v14 = vld [vmem:[%s1 + $0x2] sm:$0x1]
    %v15 = vld [vmem:[%s1 + $0x3] sm:$0x1]
    %v16 = vld [vmem:[%s1 + $0x4] sm:$0x1]
    %v17 = vld [vmem:[%s1 + $0x5] sm:$0x1]
    %v18 = vld [vmem:[%s1 + $0x6] sm:$0x1]
    %v19 = vld [vmem:[%s1 + $0x7] sm:$0x1]
    %v20 = vld [vmem:[%s1 + $0x8] sm:$0xff]
    %v21 = vld [vmem:[%s1 + $0x10] sm:$0xff]
    %v22 = vld [vmem:[%s1 + $0x18] sm:$0xff]
    %v23 = vld [vmem:[%s1 + $0x20] sm:$0xff]
    %v24 = vld [vmem:[%s1 + $0x28] sm:$0xff]
    %v25 = vld [vmem:[%s1 + $0x30] sm:$0xff]
    %v26 = vld [vmem:[%s1 + $0x38] sm:$0xff]
    %v27 = vld [vmem:[%s1 + $0x40] sm:$0xff]
    %v28 = vld [vmem:[%s1 + $0x48] sm:$0xff]
    %v29 = vld [vmem:[%s1 + $0x50] sm:$0xff]
    %v30 = vld [vmem:[%s1 + $0x58] sm:$0xff]
    %v31 = vld [vmem:[%s1 + $0x60] sm:$0xff]
    %v32 = vld [vmem:[%s1 + $0x68] sm:$0xff]
    %v33 = vld [vmem:[%s1 + $0x70] sm:$0xff]
    %v34 = vld [vmem:[%s1 + $0x78] sm:$0xff]
    %v35 = vld [vmem:[%s1 + $0x80] sm:$0xff]
    %v36 = vld [vmem:[%s1 + $0x88] sm:$0xff]
    %v37 = vld [vmem:[%s1 + $0x90] sm:$0xff]
    %v38 = vld [vmem:[%s1 + $0x98] sm:$0xff]
    %v39 = vld [vmem:[%s1 + $0xa0] sm:$0xff]
    %v40 = vld [vmem:[%s1 + $0xa8] sm:$0xff]
    %v41 = vld [vmem:[%s1 + $0xb0] sm:$0xff]
    %v42 = vld [vmem:[%s0] sm:$0xff]
    %v43 = vld [vmem:[%s0 + $0x8] sm:$0xff]
    %v44 = vld [vmem:[%s0 + $0x10] sm:$0xff]
    %v45 = vld [vmem:[%s0 + $0x18] sm:$0xff]
    %v46 = vlaneseq
    %v47 = vshrl.u32 %v46, 7
    %v48 = vsub.s32 0, %v47
    %v49 = vrot.slane %v12, %v48
    %v50 = vmul.f32 %v42, %v49
    %v51 = vmul.f32 %v43, %v49
    %v52 = vmul.f32 %v44, %v49
    %v53 = vmul.f32 %v45, %v49
    %v54 = vlaneseq
    %v55 = vshrl.u32 %v54, 7
    %v56 = vsub.s32 0, %v55
    %v57 = vrot.slane %v13, %v56
    %v58 = vadd.f32 %v50, %v57
    %v59 = vadd.f32 %v51, %v57
    %v60 = vadd.f32 %v52, %v57
    %v61 = vadd.f32 %v53, %v57
    %v62 = vmax.f32 %v58, 0.0
    %v63 = vmax.f32 %v59, 0.0
    %v64 = vmax.f32 %v60, 0.0
    %v65 = vmax.f32 %v61, 0.0
    %v66 = vlaneseq
    %v67 = vshrl.u32 %v66, 7
    %v68 = vsub.s32 0, %v67
    %v69 = vrot.slane %v14, %v68
    %vm70 = vcmask 261120
    %v72 = vsel %vm70, %v62, 0
    %v75 = vsel %vm70, %v63, 0
    %v78 = vsel %vm70, %v64, 0
    %v81 = vsel %vm70, %v65, 0
    %83 = vmatprep.subr.mxu0 0.0
    %84 = vmatpush1.msra.mxu0 0.0
    %85 = vmatprep.subr.mxu0 0.0
    %86 = vmatpush1.msra.mxu0 0.0
    %87 = vmatprep.subr.mxu0 0.0
    %88 = vmatpush1.msra.mxu0 0.0
    %89 = vmatprep.subr.mxu0 0.0
    %90 = vmatpush1.msra.mxu0 0.0
    %91 = vmatprep.subr.mxu0 0.0
    %92 = vmatpush1.msra.mxu0 0.0
    %93 = vmatprep.subr.mxu0 0.0
    %94 = vmatpush1.msra.mxu0 0.0
    %95 = vmatprep.subr.mxu0 0.0
    %96 = vmatpush1.msra.mxu0 0.0
    %97 = vmatprep.subr.mxu0 0.0
    %98 = vmatpush1.msra.mxu0 0.0
    %99 = vmatprep.subr.mxu0 0.0
    %100 = vmatpush1.msra.mxu0 0.0
    %101 = vmatprep.subr.mxu0 0.0
    %102 = vmatpush1.msra.mxu0 0.0
    %103 = vmatprep.subr.mxu0 0.0
    %104 = vmatpush1.msra.mxu0 0.0
    %105 = vmatprep.subr.mxu0 0.0
    %106 = vmatpush1.msra.mxu0 0.0
    %107 = vmatprep.subr.mxu0 0.0
    %108 = vmatpush1.msra.mxu0 %v23
    %109 = vmatprep.subr.mxu0 0.0
    %110 = vmatpush1.msra.mxu0 %v22
    %111 = vmatprep.subr.mxu0 0.0
    %112 = vmatpush1.msra.mxu0 %v21
    %113 = vmatprep.subr.mxu0 0.0
    %114 = vmatpush1.msra.mxu0 %v20
    %115 = vmatprep.subr.mxu0 0.0
    %116 = vmatpush2.msra.mxu0 0.0
    %117 = vmatprep.subr.mxu0 0.0
    %118 = vmatpush2.msra.mxu0 0.0
    %119 = vmatprep.subr.mxu0 0.0
    %120 = vmatpush2.msra.mxu0 0.0
    %121 = vmatprep.subr.mxu0 0.0
    %122 = vmatpush2.msra.mxu0 0.0
    %123 = vmatprep.subr.mxu0 0.0
    %124 = vmatpush2.msra.mxu0 0.0
    %125 = vmatprep.subr.mxu0 0.0
    %126 = vmatpush2.msra.mxu0 0.0
    %127 = vmatprep.subr.mxu0 0.0
    %128 = vmatpush2.msra.mxu0 0.0
    %129 = vmatprep.subr.mxu0 0.0
    %130 = vmatpush2.msra.mxu0 0.0
    %131 = vmatprep.subr.mxu0 0.0
    %132 = vmatpush2.msra.mxu0 0.0
    %133 = vmatprep.subr.mxu0 0.0
    %134 = vmatpush2.msra.mxu0 0.0
    %135 = vmatprep.subr.mxu0 0.0
    %136 = vmatpush2.msra.mxu0 0.0
    %137 = vmatprep.subr.mxu0 0.0
    %138 = vmatpush2.msra.mxu0 0.0
    %139 = vmatprep.subr.mxu0 0.0
    %140 = vmatpush2.msra.mxu0 0.0
    %141 = vmatprep.subr.mxu0 0.0
    %142 = vmatpush2.msra.mxu0 0.0
    %143 = vmatprep.subr.mxu0 0.0
    %144 = vmatpush2.msra.mxu0 0.0
    %145 = vmatprep.subr.mxu0 0.0
    %146 = vmatpush2.msra.mxu0 0.0
    %147 = vmatprep.mubr.f32.mxu0 0.0
    %148 = vmatmul.mubr.f32.gmra.mxu0 %v72
    %v149 = vpop.f32.mrf.mxu0
    %v150 = vadd.f32 %v69, %v149
    %v151 = vpop.f32.mrf.mxu0
    %152 = vmatprep.mubr.f32.mxu0 0.0
    %153 = vmatmul.mubr.f32.gmra.mxu0 %v75
    %v154 = vpop.f32.mrf.mxu0
    %v155 = vadd.f32 %v69, %v154
    %v156 = vpop.f32.mrf.mxu0
    %157 = vmatprep.mubr.f32.mxu0 0.0
    %158 = vmatmul.mubr.f32.gmra.mxu0 %v78
    %v159 = vpop.f32.mrf.mxu0
    %v160 = vadd.f32 %v69, %v159
    %v161 = vpop.f32.mrf.mxu0
    %162 = vmatprep.mubr.f32.mxu0 0.0
    %163 = vmatmul.mubr.f32.gmra.mxu0 %v81
    %v164 = vpop.f32.mrf.mxu0
    %v165 = vadd.f32 %v69, %v164
    %v166 = vpop.f32.mrf.mxu0
    %167 = vdwg.mxu0
    %vm168 = vcmask 130048
    %v170 = vsel %vm168, %v150, 0
    %v173 = vsel %vm168, %v155, 0
    %v176 = vsel %vm168, %v160, 0
    %v179 = vsel %vm168, %v165, 0
    %181 = vmatprep.subr.mxu0 0.0
    %182 = vmatpush1.msra.mxu0 0.0
    %183 = vmatprep.subr.mxu0 0.0
    %184 = vmatpush1.msra.mxu0 0.0
    %185 = vmatprep.subr.mxu0 0.0
    %186 = vmatpush1.msra.mxu0 0.0
    %187 = vmatprep.subr.mxu0 0.0
    %188 = vmatpush1.msra.mxu0 0.0
    %189 = vmatprep.subr.mxu0 0.0
    %190 = vmatpush1.msra.mxu0 0.0
    %191 = vmatprep.subr.mxu0 0.0
    %192 = vmatpush1.msra.mxu0 0.0
    %193 = vmatprep.subr.mxu0 0.0
    %194 = vmatpush1.msra.mxu0 0.0
    %195 = vmatprep.subr.mxu0 0.0
    %196 = vmatpush1.msra.mxu0 0.0
    %197 = vmatprep.subr.mxu0 0.0
    %198 = vmatpush1.msra.mxu0 0.0
    %199 = vmatprep.subr.mxu0 0.0
    %200 = vmatpush1.msra.mxu0 0.0
    %201 = vmatprep.subr.mxu0 0.0
    %202 = vmatpush1.msra.mxu0 0.0
    %203 = vmatprep.subr.mxu0 0.0
    %204 = vmatpush1.msra.mxu0 0.0
    %205 = vmatprep.subr.mxu0 0.0
    %206 = vmatpush1.msra.mxu0 0.0
    %207 = vmatprep.subr.mxu0 0.0
    %208 = vmatpush1.msra.mxu0 0.0
    %209 = vmatprep.subr.mxu0 0.0
    %210 = vmatpush1.msra.mxu0 %v25
    %211 = vmatprep.subr.mxu0 0.0
    %212 = vmatpush1.msra.mxu0 %v24
    %213 = vmatprep.subr.mxu0 0.0
    %214 = vmatpush2.msra.mxu0 0.0
    %215 = vmatprep.subr.mxu0 0.0
    %216 = vmatpush2.msra.mxu0 0.0
    %217 = vmatprep.subr.mxu0 0.0
    %218 = vmatpush2.msra.mxu0 0.0
    %219 = vmatprep.subr.mxu0 0.0
    %220 = vmatpush2.msra.mxu0 0.0
    %221 = vmatprep.subr.mxu0 0.0
    %222 = vmatpush2.msra.mxu0 0.0
    %223 = vmatprep.subr.mxu0 0.0
    %224 = vmatpush2.msra.mxu0 0.0
    %225 = vmatprep.subr.mxu0 0.0
    %226 = vmatpush2.msra.mxu0 0.0
    %227 = vmatprep.subr.mxu0 0.0
    %228 = vmatpush2.msra.mxu0 0.0
    %229 = vmatprep.subr.mxu0 0.0
    %230 = vmatpush2.msra.mxu0 0.0
    %231 = vmatprep.subr.mxu0 0.0
    %232 = vmatpush2.msra.mxu0 0.0
    %233 = vmatprep.subr.mxu0 0.0
    %234 = vmatpush2.msra.mxu0 0.0
    %235 = vmatprep.subr.mxu0 0.0
    %236 = vmatpush2.msra.mxu0 0.0
    %237 = vmatprep.subr.mxu0 0.0
    %238 = vmatpush2.msra.mxu0 0.0
    %239 = vmatprep.subr.mxu0 0.0
    %240 = vmatpush2.msra.mxu0 0.0
    %241 = vmatprep.subr.mxu0 0.0
    %242 = vmatpush2.msra.mxu0 0.0
    %243 = vmatprep.subr.mxu0 0.0
    %244 = vmatpush2.msra.mxu0 0.0
    %245 = vmatprep.mubr.f32.mxu0 0.0
    %246 = vmatmul.mubr.f32.gmra.mxu0 %v170
    %v247 = vpop.f32.mrf.mxu0
    %v248 = vadd.f32 0.0, %v247
    %v249 = vpop.f32.mrf.mxu0
    %250 = vmatprep.mubr.f32.mxu0 0.0
    %251 = vmatmul.mubr.f32.gmra.mxu0 %v173
    %v252 = vpop.f32.mrf.mxu0
    %v253 = vadd.f32 0.0, %v252
    %v254 = vpop.f32.mrf.mxu0
    %255 = vmatprep.mubr.f32.mxu0 0.0
    %256 = vmatmul.mubr.f32.gmra.mxu0 %v176
    %v257 = vpop.f32.mrf.mxu0
    %v258 = vadd.f32 0.0, %v257
    %v259 = vpop.f32.mrf.mxu0
    %260 = vmatprep.mubr.f32.mxu0 0.0
    %261 = vmatmul.mubr.f32.gmra.mxu0 %v179
    %v262 = vpop.f32.mrf.mxu0
    %v263 = vadd.f32 0.0, %v262
    %v264 = vpop.f32.mrf.mxu0
    %265 = vdwg.mxu0
    %v266 = vadd.f32 %v248, %v253
    %v267 = vadd.f32 %v266, %v258
    %v268 = vadd.f32 %v267, %v263
    %v269 = vrot.slane %v268, 4
    %v270 = vadd.f32 %v268, %v269
    %v271 = vrot.slane %v270, 2
    %v272 = vadd.f32 %v270, %v271
    %v273 = vrot.slane %v272, 1
    %v274 = vadd.f32 %v272, %v273
    %v275 = vmul.f32 %v274, 0.03125
    %v276 = vsub.f32 %v248, %v275
    %v277 = vsub.f32 %v253, %v275
    %v278 = vsub.f32 %v258, %v275
    %v279 = vsub.f32 %v263, %v275
    %v280 = vmul.f32 %v276, %v276
    %v281 = vmul.f32 %v277, %v277
    %v282 = vmul.f32 %v278, %v278
    %v283 = vmul.f32 %v279, %v279
    %288 = vrot.lane.b32.xlu0 %v280, 64
    %v289 = vpop.permute.xlu0 %288
    %290 = vrot.lane.b32.xlu0 %v281, 64
    %v291 = vpop.permute.xlu0 %290
    %292 = vrot.lane.b32.xlu0 %v282, 64
    %v293 = vpop.permute.xlu0 %292
    %294 = vrot.lane.b32.xlu0 %v283, 64
    %v295 = vpop.permute.xlu0 %294
    %v300 = vadd.f32 %v280, %v289
    %v301 = vadd.f32 %v281, %v291
    %v302 = vadd.f32 %v282, %v293
    %v303 = vadd.f32 %v283, %v295
    %vm304 = vcmask 523264
    %v305 = vsel %vm304, %v300, 0.0
    %v306 = vsel %vm304, %v301, 0.0
    %v307 = vadd.f32 %v305, %v306
    %v308 = vsel %vm304, %v302, 0.0
    %v309 = vadd.f32 %v307, %v308
    %v310 = vsel %vm304, %v303, 0.0
    %v311 = vadd.f32 %v309, %v310
    %v312 = vrot.slane %v311, 4
    %v313 = vadd.f32 %v311, %v312
    %v314 = vrot.slane %v313, 2
    %v315 = vadd.f32 %v313, %v314
    %v316 = vrot.slane %v315, 1
    %v317 = vadd.f32 %v315, %v316
    %v318 = vrot.slane %v276, 4
    %v319 = vadd.f32 %v276, %v318
    %v320 = vrot.slane %v319, 2
    %v321 = vadd.f32 %v319, %v320
    %v322 = vrot.slane %v321, 1
    %v323 = vadd.f32 %v321, %v322
    %v324 = vrot.slane %v277, 4
    %v325 = vadd.f32 %v277, %v324
    %v326 = vrot.slane %v325, 2
    %v327 = vadd.f32 %v325, %v326
    %v328 = vrot.slane %v327, 1
    %v329 = vadd.f32 %v327, %v328
    %v330 = vrot.slane %v278, 4
    %v331 = vadd.f32 %v278, %v330
    %v332 = vrot.slane %v331, 2
    %v333 = vadd.f32 %v331, %v332
    %v334 = vrot.slane %v333, 1
    %v335 = vadd.f32 %v333, %v334
    %v336 = vrot.slane %v279, 4
    %v337 = vadd.f32 %v279, %v336
    %v338 = vrot.slane %v337, 2
    %v339 = vadd.f32 %v337, %v338
    %v340 = vrot.slane %v339, 1
    %v341 = vadd.f32 %v339, %v340
    %346 = vrot.lane.b32.xlu0 %v323, 64
    %v347 = vpop.permute.xlu0 %346
    %348 = vrot.lane.b32.xlu0 %v329, 64
    %v349 = vpop.permute.xlu0 %348
    %350 = vrot.lane.b32.xlu0 %v335, 64
    %v351 = vpop.permute.xlu0 %350
    %352 = vrot.lane.b32.xlu0 %v341, 64
    %v353 = vpop.permute.xlu0 %352
    %v358 = vmul.f32 %v323, %v347
    %v359 = vmul.f32 %v329, %v349
    %v360 = vmul.f32 %v335, %v351
    %v361 = vmul.f32 %v341, %v353
    %v366 = vrot.slane %v359, 7
    %vm367 = vcmask 1041409
    %v368 = vsel %vm367, %v366, %v358
    %v369 = vrot.slane %v360, 6
    %vm370 = vcmask 1042434
    %v371 = vsel %vm370, %v369, %v368
    %v372 = vrot.slane %v361, 5
    %vm373 = vcmask 1043459
    %v374 = vsel %vm373, %v372, %v371
    %vm376 = vcmask 519168
    %v377 = vsel %vm376, %v374, 0.0
    %v378 = vrot.slane %v377, 4
    %v379 = vadd.f32 %v377, %v378
    %v380 = vrot.slane %v379, 2
    %v381 = vadd.f32 %v379, %v380
    %v382 = vrot.slane %v381, 1
    %v383 = vadd.f32 %v381, %v382
    %388 = vrot.lane.b32.xlu0 %v276, 64
    %v389 = vpop.permute.xlu0 %388
    %390 = vrot.lane.b32.xlu0 %v277, 64
    %v391 = vpop.permute.xlu0 %390
    %392 = vrot.lane.b32.xlu0 %v278, 64
    %v393 = vpop.permute.xlu0 %392
    %394 = vrot.lane.b32.xlu0 %v279, 64
    %v395 = vpop.permute.xlu0 %394
    %v400 = vmul.f32 %v276, %v389
    %v401 = vmul.f32 %v277, %v391
    %v402 = vmul.f32 %v278, %v393
    %v403 = vmul.f32 %v279, %v395
    %v404 = vsel %vm304, %v400, 0.0
    %v405 = vsel %vm304, %v401, 0.0
    %v406 = vadd.f32 %v404, %v405
    %v407 = vsel %vm304, %v402, 0.0
    %v408 = vadd.f32 %v406, %v407
    %v409 = vsel %vm304, %v403, 0.0
    %v410 = vadd.f32 %v408, %v409
    %v411 = vrot.slane %v410, 4
    %v412 = vadd.f32 %v410, %v411
    %v413 = vrot.slane %v412, 2
    %v414 = vadd.f32 %v412, %v413
    %v415 = vrot.slane %v414, 1
    %v416 = vadd.f32 %v414, %v415
    %v417 = vsub.f32 %v383, %v416
    %v418 = vmul.f32 %v317, 7.0
    %v419 = vmul.f32 %v417, 2.0
    %v420 = vadd.f32 %v418, %v419
    %v421 = vmul.f32 %v420, 0.004464286
    %v422 = vmax.f32 %v421, 0.0
    %v423 = vadd.f32 %v422, 1e-05
    %v424 = vrsqrt.pop %v423
    %v425 = vmul.f32 %v424, %v15
    %427 = vrot.lane.b32.xlu0 %v425, 64
    %v428 = vpop.permute.xlu0 %427
    %v430 = vsel %vm304, %v425, %v428
    %v431 = vlaneseq
    %v432 = vshrl.u32 %v431, 7
    %v433 = vsub.s32 0, %v432
    %v434 = vrot.slane %v430, %v433
    %v435 = vmul.f32 %v276, %v434
    %v436 = vmul.f32 %v277, %v434
    %v437 = vmul.f32 %v278, %v434
    %v438 = vmul.f32 %v279, %v434
    %v439 = vlaneseq
    %v440 = vshrl.u32 %v439, 7
    %v441 = vsub.s32 0, %v440
    %v442 = vrot.slane %v16, %v441
    %v443 = vadd.f32 %v435, %v442
    %v444 = vadd.f32 %v436, %v442
    %v445 = vadd.f32 %v437, %v442
    %v446 = vadd.f32 %v438, %v442
    %447 = vmatprep.subr.mxu0 0.0
    %448 = vmatpush1.msra.mxu0 %v41
    %449 = vmatprep.subr.mxu0 0.0
    %450 = vmatpush1.msra.mxu0 %v40
    %451 = vmatprep.subr.mxu0 0.0
    %452 = vmatpush1.msra.mxu0 %v39
    %453 = vmatprep.subr.mxu0 0.0
    %454 = vmatpush1.msra.mxu0 %v38
    %455 = vmatprep.subr.mxu0 0.0
    %456 = vmatpush1.msra.mxu0 %v37
    %457 = vmatprep.subr.mxu0 0.0
    %458 = vmatpush1.msra.mxu0 %v36
    %459 = vmatprep.subr.mxu0 0.0
    %460 = vmatpush1.msra.mxu0 %v35
    %461 = vmatprep.subr.mxu0 0.0
    %462 = vmatpush1.msra.mxu0 %v34
    %463 = vmatprep.subr.mxu0 0.0
    %464 = vmatpush1.msra.mxu0 %v33
    %465 = vmatprep.subr.mxu0 0.0
    %466 = vmatpush1.msra.mxu0 %v32
    %467 = vmatprep.subr.mxu0 0.0
    %468 = vmatpush1.msra.mxu0 %v31
    %469 = vmatprep.subr.mxu0 0.0
    %470 = vmatpush1.msra.mxu0 %v30
    %471 = vmatprep.subr.mxu0 0.0
    %472 = vmatpush1.msra.mxu0 %v29
    %473 = vmatprep.subr.mxu0 0.0
    %474 = vmatpush1.msra.mxu0 %v28
    %475 = vmatprep.subr.mxu0 0.0
    %476 = vmatpush1.msra.mxu0 %v27
    %477 = vmatprep.subr.mxu0 0.0
    %478 = vmatpush1.msra.mxu0 %v26
    %479 = vmatprep.subr.mxu0 0.0
    %480 = vmatpush2.msra.mxu0 0.0
    %481 = vmatprep.subr.mxu0 0.0
    %482 = vmatpush2.msra.mxu0 0.0
    %483 = vmatprep.subr.mxu0 0.0
    %484 = vmatpush2.msra.mxu0 0.0
    %485 = vmatprep.subr.mxu0 0.0
    %486 = vmatpush2.msra.mxu0 0.0
    %487 = vmatprep.subr.mxu0 0.0
    %488 = vmatpush2.msra.mxu0 0.0
    %489 = vmatprep.subr.mxu0 0.0
    %490 = vmatpush2.msra.mxu0 0.0
    %491 = vmatprep.subr.mxu0 0.0
    %492 = vmatpush2.msra.mxu0 0.0
    %493 = vmatprep.subr.mxu0 0.0
    %494 = vmatpush2.msra.mxu0 0.0
    %495 = vmatprep.subr.mxu0 0.0
    %496 = vmatpush2.msra.mxu0 0.0
    %497 = vmatprep.subr.mxu0 0.0
    %498 = vmatpush2.msra.mxu0 0.0
    %499 = vmatprep.subr.mxu0 0.0
    %500 = vmatpush2.msra.mxu0 0.0
    %501 = vmatprep.subr.mxu0 0.0
    %502 = vmatpush2.msra.mxu0 0.0
    %503 = vmatprep.subr.mxu0 0.0
    %504 = vmatpush2.msra.mxu0 0.0
    %505 = vmatprep.subr.mxu0 0.0
    %506 = vmatpush2.msra.mxu0 0.0
    %507 = vmatprep.subr.mxu0 0.0
    %508 = vmatpush2.msra.mxu0 0.0
    %509 = vmatprep.subr.mxu0 0.0
    %510 = vmatpush2.msra.mxu0 0.0
    %511 = vmatprep.mubr.f32.mxu0 0.0
    %512 = vmatmul.mubr.f32.gmra.mxu0 %v443
    %v513 = vpop.f32.mrf.mxu0
    %v514 = vadd.f32 0.0, %v513
    %v515 = vpop.f32.mrf.mxu0
    %516 = vmatprep.mubr.f32.mxu0 0.0
    %517 = vmatmul.mubr.f32.gmra.mxu0 %v444
    %v518 = vpop.f32.mrf.mxu0
    %v519 = vadd.f32 0.0, %v518
    %v520 = vpop.f32.mrf.mxu0
    %521 = vmatprep.mubr.f32.mxu0 0.0
    %522 = vmatmul.mubr.f32.gmra.mxu0 %v445
    %v523 = vpop.f32.mrf.mxu0
    %v524 = vadd.f32 0.0, %v523
    %v525 = vpop.f32.mrf.mxu0
    %526 = vmatprep.mubr.f32.mxu0 0.0
    %527 = vmatmul.mubr.f32.gmra.mxu0 %v446
    %v528 = vpop.f32.mrf.mxu0
    %v529 = vadd.f32 0.0, %v528
    %v530 = vpop.f32.mrf.mxu0
    %531 = vdwg.mxu0
    %v532 = vsel %vm70, %v514, 0.0
    %v533 = vsel %vm70, %v519, 0.0
    %v534 = vadd.f32 %v532, %v533
    %v535 = vsel %vm70, %v524, 0.0
    %v536 = vadd.f32 %v534, %v535
    %v537 = vsel %vm70, %v529, 0.0
    %v538 = vadd.f32 %v536, %v537
    %v539 = vrot.slane %v538, 4
    %v540 = vadd.f32 %v538, %v539
    %v541 = vrot.slane %v540, 2
    %v542 = vadd.f32 %v540, %v541
    %v543 = vrot.slane %v542, 1
    %v544 = vadd.f32 %v542, %v543
    %v545 = vmul.f32 %v544, 0.03125
    %v546 = vsub.f32 %v514, %v545
    %v547 = vsub.f32 %v519, %v545
    %v548 = vsub.f32 %v524, %v545
    %v549 = vsub.f32 %v529, %v545
    %v550 = vmul.f32 %v546, %v546
    %v551 = vmul.f32 %v547, %v547
    %v552 = vmul.f32 %v548, %v548
    %v553 = vmul.f32 %v549, %v549
    %558 = vrot.lane.b32.xlu0 %v550, 112
    %v559 = vpop.permute.xlu0 %558
    %560 = vrot.lane.b32.xlu0 %v551, 112
    %v561 = vpop.permute.xlu0 %560
    %562 = vrot.lane.b32.xlu0 %v552, 112
    %v563 = vpop.permute.xlu0 %562
    %564 = vrot.lane.b32.xlu0 %v553, 112
    %v565 = vpop.permute.xlu0 %564
    %v570 = vadd.f32 %v550, %v559
    %v571 = vadd.f32 %v551, %v561
    %v572 = vadd.f32 %v552, %v563
    %v573 = vadd.f32 %v553, %v565
    %v574 = vsel %vm168, %v570, 0.0
    %v575 = vsel %vm168, %v571, 0.0
    %v576 = vadd.f32 %v574, %v575
    %v577 = vsel %vm168, %v572, 0.0
    %v578 = vadd.f32 %v576, %v577
    %v579 = vsel %vm168, %v573, 0.0
    %v580 = vadd.f32 %v578, %v579
    %v581 = vrot.slane %v580, 4
    %v582 = vadd.f32 %v580, %v581
    %v583 = vrot.slane %v582, 2
    %v584 = vadd.f32 %v582, %v583
    %v585 = vrot.slane %v584, 1
    %v586 = vadd.f32 %v584, %v585
    %v587 = vsel %vm70, %v546, 0.0
    %v588 = vrot.slane %v587, 4
    %v589 = vadd.f32 %v587, %v588
    %v590 = vrot.slane %v589, 2
    %v591 = vadd.f32 %v589, %v590
    %v592 = vrot.slane %v591, 1
    %v593 = vadd.f32 %v591, %v592
    %v594 = vsel %vm70, %v547, 0.0
    %v595 = vrot.slane %v594, 4
    %v596 = vadd.f32 %v594, %v595
    %v597 = vrot.slane %v596, 2
    %v598 = vadd.f32 %v596, %v597
    %v599 = vrot.slane %v598, 1
    %v600 = vadd.f32 %v598, %v599
    %v601 = vsel %vm70, %v548, 0.0
    %v602 = vrot.slane %v601, 4
    %v603 = vadd.f32 %v601, %v602
    %v604 = vrot.slane %v603, 2
    %v605 = vadd.f32 %v603, %v604
    %v606 = vrot.slane %v605, 1
    %v607 = vadd.f32 %v605, %v606
    %v608 = vsel %vm70, %v549, 0.0
    %v609 = vrot.slane %v608, 4
    %v610 = vadd.f32 %v608, %v609
    %v611 = vrot.slane %v610, 2
    %v612 = vadd.f32 %v610, %v611
    %v613 = vrot.slane %v612, 1
    %v614 = vadd.f32 %v612, %v613
    %619 = vrot.lane.b32.xlu0 %v593, 112
    %v620 = vpop.permute.xlu0 %619
    %621 = vrot.lane.b32.xlu0 %v600, 112
    %v622 = vpop.permute.xlu0 %621
    %623 = vrot.lane.b32.xlu0 %v607, 112
    %v624 = vpop.permute.xlu0 %623
    %625 = vrot.lane.b32.xlu0 %v614, 112
    %v626 = vpop.permute.xlu0 %625
    %v631 = vmul.f32 %v593, %v620
    %v632 = vmul.f32 %v600, %v622
    %v633 = vmul.f32 %v607, %v624
    %v634 = vmul.f32 %v614, %v626
    %v639 = vrot.slane %v632, 7
    %v640 = vsel %vm367, %v639, %v631
    %v641 = vrot.slane %v633, 6
    %v642 = vsel %vm370, %v641, %v640
    %v643 = vrot.slane %v634, 5
    %v644 = vsel %vm373, %v643, %v642
    %vm646 = vcmask 125952
    %v647 = vsel %vm646, %v644, 0.0
    %v648 = vrot.slane %v647, 4
    %v649 = vadd.f32 %v647, %v648
    %v650 = vrot.slane %v649, 2
    %v651 = vadd.f32 %v649, %v650
    %v652 = vrot.slane %v651, 1
    %v653 = vadd.f32 %v651, %v652
    %658 = vrot.lane.b32.xlu0 %v546, 112
    %v659 = vpop.permute.xlu0 %658
    %660 = vrot.lane.b32.xlu0 %v547, 112
    %v661 = vpop.permute.xlu0 %660
    %662 = vrot.lane.b32.xlu0 %v548, 112
    %v663 = vpop.permute.xlu0 %662
    %664 = vrot.lane.b32.xlu0 %v549, 112
    %v665 = vpop.permute.xlu0 %664
    %v670 = vmul.f32 %v546, %v659
    %v671 = vmul.f32 %v547, %v661
    %v672 = vmul.f32 %v548, %v663
    %v673 = vmul.f32 %v549, %v665
    %v674 = vsel %vm168, %v670, 0.0
    %v675 = vsel %vm168, %v671, 0.0
    %v676 = vadd.f32 %v674, %v675
    %v677 = vsel %vm168, %v672, 0.0
    %v678 = vadd.f32 %v676, %v677
    %v679 = vsel %vm168, %v673, 0.0
    %v680 = vadd.f32 %v678, %v679
    %v681 = vrot.slane %v680, 4
    %v682 = vadd.f32 %v680, %v681
    %v683 = vrot.slane %v682, 2
    %v684 = vadd.f32 %v682, %v683
    %v685 = vrot.slane %v684, 1
    %v686 = vadd.f32 %v684, %v685
    %v687 = vsub.f32 %v653, %v686
    %v688 = vmul.f32 %v586, 7.0
    %v689 = vmul.f32 %v687, 2.0
    %v690 = vadd.f32 %v688, %v689
    %v691 = vmul.f32 %v690, 0.004464286
    %v692 = vmax.f32 %v691, 0.0
    %v693 = vadd.f32 %v692, 1e-05
    %v694 = vrsqrt.pop %v693
    %v695 = vmul.f32 %v694, %v17
    %697 = vrot.lane.b32.xlu0 %v695, 16
    %v698 = vpop.permute.xlu0 %697
    %v700 = vsel %vm168, %v695, %v698
    %v701 = vlaneseq
    %v702 = vshrl.u32 %v701, 7
    %v703 = vsub.s32 0, %v702
    %v704 = vrot.slane %v700, %v703
    %v705 = vmul.f32 %v546, %v704
    %v706 = vmul.f32 %v547, %v704
    %v707 = vmul.f32 %v548, %v704
    %v708 = vmul.f32 %v549, %v704
    %v709 = vlaneseq
    %v710 = vshrl.u32 %v709, 7
    %v711 = vsub.s32 0, %v710
    %v712 = vrot.slane %v18, %v711
    %v713 = vadd.f32 %v705, %v712
    %v714 = vadd.f32 %v706, %v712
    %v715 = vadd.f32 %v707, %v712
    %v716 = vadd.f32 %v708, %v712
    %v717 = vlaneseq
    %v718 = vshrl.u32 %v717, 7
    %v719 = vsub.s32 0, %v718
    %v720 = vrot.slane %v19, %v719
    %v721 = vmul.f32 %v713, %v720
    %v722 = vmul.f32 %v714, %v720
    %v723 = vmul.f32 %v715, %v720
    %v724 = vmul.f32 %v716, %v720
    %v725 = vsel %vm168, %v721, 0.0
    %726 = vadd.xlane.f32.xlu0 %v725
    %v727 = vpop.xlane.xlu0 %726
    %v728 = vsel %vm168, %v722, 0.0
    %729 = vadd.xlane.f32.xlu0 %v728
    %v730 = vpop.xlane.xlu0 %729
    %v731 = vsel %vm168, %v723, 0.0
    %732 = vadd.xlane.f32.xlu0 %v731
    %v733 = vpop.xlane.xlu0 %732
    %v734 = vsel %vm168, %v724, 0.0
    %735 = vadd.xlane.f32.xlu0 %v734
    %v736 = vpop.xlane.xlu0 %735
    %741 = vrot.lane.b32.xlu0 %v721, 112
    %v742 = vpop.permute.xlu0 %741
    %743 = vrot.lane.b32.xlu0 %v722, 112
    %v744 = vpop.permute.xlu0 %743
    %745 = vrot.lane.b32.xlu0 %v723, 112
    %v746 = vpop.permute.xlu0 %745
    %747 = vrot.lane.b32.xlu0 %v724, 112
    %v748 = vpop.permute.xlu0 %747
    %v753 = vsel %vm168, %v742, 0.0
    %754 = vadd.xlane.f32.xlu0 %v753
    %v755 = vpop.xlane.xlu0 %754
    %v756 = vsel %vm168, %v744, 0.0
    %757 = vadd.xlane.f32.xlu0 %v756
    %v758 = vpop.xlane.xlu0 %757
    %v759 = vsel %vm168, %v746, 0.0
    %760 = vadd.xlane.f32.xlu0 %v759
    %v761 = vpop.xlane.xlu0 %760
    %v762 = vsel %vm168, %v748, 0.0
    %763 = vadd.xlane.f32.xlu0 %v762
    %v764 = vpop.xlane.xlu0 %763
    %v769 = vlaneseq
    %v770 = vand.u32 %v769, 127
    %v771 = vlaneseq
    %v772 = vshrl.u32 %v771, 7
    %v773 = vsub.s32 %v770, %v772
    %v774 = vrot.slane %v755, %v773
    %v775 = vlaneseq
    %v776 = vshrl.u32 %v775, 7
    %v777 = vsub.s32 %v770, %v776
    %v778 = vrot.slane %v758, %v777
    %v779 = vlaneseq
    %v780 = vshrl.u32 %v779, 7
    %v781 = vsub.s32 %v770, %v780
    %v782 = vrot.slane %v761, %v781
    %v783 = vlaneseq
    %v784 = vshrl.u32 %v783, 7
    %v785 = vsub.s32 %v770, %v784
    %v786 = vrot.slane %v764, %v785
    %v787 = vsel %vm367, %v778, %v774
    %v788 = vsel %vm370, %v782, %v787
    %v789 = vsel %vm373, %v786, %v788
    %vm791 = vcmask 60416
    %v792 = vsel %vm791, %v789, 0.0
    %793 = vadd.xlane.f32.xlu0 %v792
    %v794 = vpop.xlane.xlu0 %793
    %v795 = vmul.f32 %v727, 7.0
    %v796 = vmul.f32 %v730, 7.0
    %v797 = vmul.f32 %v733, 7.0
    %v798 = vmul.f32 %v736, 7.0
    %v799 = vsub.f32 %v794, %v789
    %v801 = vlaneseq
    %v802 = vshrl.u32 %v801, 7
    %v803 = vsub.s32 0, %v802
    %v804 = vrot.slane %v799, %v803
    %806 = vbcast.lane.b32.xlu0 %v804, 256
    %v807 = vpop.permute.xlu0 %806
    %v808 = vlaneseq
    %v809 = vshrl.u32 %v808, 7
    %v810 = vsub.s32 1, %v809
    %v811 = vrot.slane %v799, %v810
    %813 = vbcast.lane.b32.xlu0 %v811, 256
    %v814 = vpop.permute.xlu0 %813
    %v815 = vlaneseq
    %v816 = vshrl.u32 %v815, 7
    %v817 = vsub.s32 2, %v816
    %v818 = vrot.slane %v799, %v817
    %820 = vbcast.lane.b32.xlu0 %v818, 256
    %v821 = vpop.permute.xlu0 %820
    %v822 = vlaneseq
    %v823 = vshrl.u32 %v822, 7
    %v824 = vsub.s32 3, %v823
    %v825 = vrot.slane %v799, %v824
    %827 = vbcast.lane.b32.xlu0 %v825, 256
    %v828 = vpop.permute.xlu0 %827
    %v833 = vadd.f32 %v795, %v807
    %v834 = vadd.f32 %v796, %v814
    %v835 = vadd.f32 %v797, %v821
    %v836 = vadd.f32 %v798, %v828
    %838 = vrot.lane.b32.xlu0 %v19, 96
    %v839 = vpop.permute.xlu0 %838
    %s840 = vtos %v839
    %v841 = vstv %s840
    %v843 = vadd.f32 %v833, %v841
    %v844 = vadd.f32 %v834, %v841
    %v845 = vadd.f32 %v835, %v841
    %v846 = vadd.f32 %v836, %v841
    %851 = vset.pattern.permute.xlu0 0
    %852 = vperm.xlu0 %851, %v843
    %v853 = vpop.permute.xlu0 %852
    %854 = vset.pattern.permute.xlu0 0
    %855 = vperm.xlu0 %854, %v844
    %v856 = vpop.permute.xlu0 %855
    %857 = vset.pattern.permute.xlu0 0
    %858 = vperm.xlu0 %857, %v845
    %v859 = vpop.permute.xlu0 %858
    %860 = vset.pattern.permute.xlu0 0
    %861 = vperm.xlu0 %860, %v846
    %v862 = vpop.permute.xlu0 %861
    %v863 = vlaneseq
    %v864 = vshrl.u32 %v863, 7
    %v865 = vsub.s32 %v770, %v864
    %v866 = vrot.slane %v853, %v865
    %v867 = vlaneseq
    %v868 = vshrl.u32 %v867, 7
    %v869 = vsub.s32 %v770, %v868
    %v870 = vrot.slane %v856, %v869
    %v871 = vlaneseq
    %v872 = vshrl.u32 %v871, 7
    %v873 = vsub.s32 %v770, %v872
    %v874 = vrot.slane %v859, %v873
    %v875 = vlaneseq
    %v876 = vshrl.u32 %v875, 7
    %v877 = vsub.s32 %v770, %v876
    %v878 = vrot.slane %v862, %v877
    %v879 = vsel %vm367, %v870, %v866
    %v880 = vsel %vm370, %v874, %v879
    %v881 = vsel %vm373, %v878, %v880
    %883 = vst.msk [vmem:[#allocation2] sm:$0xf] %vm791, %v881
    // Predicated region
    $region10: #{actor_forward.1} parent=1 // pred_check
      _
    $region11: #{actor_forward.1} parent=1 // pred_check_branch
      %885 = sbr.rel (0) target = $region13
    $region12: #{actor_forward.1} parent=1 // pred_region
      %s887 = ssub.s32 64, 64
      %888 = vsyncadd [#allocation3], %s887
      %s890 = sshll.u32 [#allocation2], 4
      %s891 = int_to_ptr.vmem [resolvable:$true] %s890
      %893 = dma.vmem_to_hbm [thread:$0]  %s891, 64, %s2, [#allocation3]
    $region13: #{actor_forward.1} parent=1 // pred_fallthru
      _
    // Predicated region
    $region14: #{actor_forward.1} parent=1 // pred_check
      _
    $region15: #{actor_forward.1} parent=1 // pred_check_branch
      %895 = sbr.rel (0) target = $region17
    $region16: #{actor_forward.1} parent=1 // pred_region
      %896 = dma.done [#allocation3], 64
    $region17: #{actor_forward.1} parent=1 // pred_fallthru
      _
    %897 = vsyncpa [#allocation3], 1

</llo_original>
